<compile_context>
chip_gen: v6e
topology: v6e:2x2x1
jax: 0.10.0
libtpu: 0.0.40
codegen_flags: <defaults>
</compile_context>

<pallas_src>
import jax
import jax.numpy as jnp
import numpy as np
from jax.experimental import pallas as pl
from jax.experimental.pallas import tpu as pltpu

NEG_SLOPE = 0.01      # F.leaky_relu default negative_slope
HID = 24              # hidden width of fc1 / fc2
HID_PAD = 32          # zero-padded hidden width (S * HID_PAD lane aligned)
LANE = 128
NEG_INF = -1.0e30     # bias for padded softmax columns (finite -> no inf-inf NaN)


def _leaky_relu(v):
    return jnp.where(v > 0, v, NEG_SLOPE * v)


def _round_up(x, m):
    return (x + m - 1) // m * m


def _block_diag(w, s):
    """(In, Out) -> (s*In, s*Out) block-diagonal with s copies of w."""
    i, o = w.shape
    eye = jnp.eye(s, dtype=w.dtype)
    return (eye[:, None, :, None] * w[None, :, None, :]).reshape(s * i, s * o)


# --------------------------------------------------------------------------
# One-time parameter packing (cache the result; NOT part of the per-call path)
# --------------------------------------------------------------------------
def pack_three_fc_params(w1, b1, w2, b2, w3, b3, *, seq_len,
                         compute_dtype=jnp.bfloat16):
    """w1:(F,24) w2:(24,24) w3:(S*24,O) biases (1,·), all (in,out) layout.

    Returns a dict of padded / block-diagonal / bf16-cast tensors consumed by
    three_fc_forward.  Run once and reuse across forward calls.
    """
    S = seq_len
    O = w3.shape[-1]
    assert w3.shape[0] == S * HID
    Hp = HID_PAD
    Op = _round_up(O, LANE)

    w1p = jnp.pad(w1, ((0, 0), (0, Hp - HID)))                       # (F, Hp)
    w2p = jnp.pad(w2, ((0, Hp - HID), (0, Hp - HID)))                # (Hp, Hp)
    w1_big = _block_diag(w1p, S).astype(compute_dtype)               # (S*F, S*Hp)
    w2_big = _block_diag(w2p, S).astype(compute_dtype)               # (S*Hp, S*Hp)
    b1_big = jnp.tile(jnp.pad(b1, ((0, 0), (0, Hp - HID))),
                      (1, S)).astype(jnp.float32)                    # (1, S*Hp)
    b2_big = jnp.tile(jnp.pad(b2, ((0, 0), (0, Hp - HID))),
                      (1, S)).astype(jnp.float32)                    # (1, S*Hp)
    w3_big = jnp.pad(w3.reshape(S, HID, O),
                     ((0, 0), (0, Hp - HID), (0, Op - O)))
    w3_big = w3_big.reshape(S * Hp, Op).astype(compute_dtype)        # (S*Hp, Op)
    b3_big = jnp.pad(b3, ((0, 0), (0, Op - O)),
                     constant_values=NEG_INF).astype(jnp.float32)    # (1, Op)

    return {"w1": w1_big, "b1": b1_big, "w2": w2_big, "b2": b2_big,
            "w3": w3_big, "b3": b3_big, "seq_len": S, "n_out": O}


# --------------------------------------------------------------------------
# Kernel
# --------------------------------------------------------------------------
def _make_kernel(n_out):
    def kernel(x_ref, w1_ref, b1_ref, w2_ref, b2_ref, w3_ref, b3_ref, o_ref):
        # x_ref : (TB, S*F) f32   w1_ref: (S*F, S*Hp) bf16   b1_ref: (1, S*Hp) f32
        # w2_ref: (S*Hp,S*Hp)bf16 b2_ref: (1, S*Hp)   f32
        # w3_ref: (S*Hp, Op) bf16 b3_ref: (1, Op)     f32    o_ref : (TB, O) f32
        xb = x_ref[...].astype(w1_ref.dtype)          # cast in-kernel (free on VPU)
        h1 = jnp.dot(xb, w1_ref[...],
                     preferred_element_type=jnp.float32) + b1_ref[...]
        h1 = _leaky_relu(h1)

        h2 = jnp.dot(h1.astype(w2_ref.dtype), w2_ref[...],
                     preferred_element_type=jnp.float32) + b2_ref[...]
        h2 = _leaky_relu(h2)

        # h2 is already the row-major (TB, S*Hp) flatten -> single K=S*Hp matmul.
        logits = jnp.dot(h2.astype(w3_ref.dtype), w3_ref[...],
                         preferred_element_type=jnp.float32) + b3_ref[...]

        # softmax over the padded lane dim; padded columns have -1e30 bias -> 0.
        m = jnp.max(logits, axis=-1, keepdims=True)
        e = jnp.exp(logits - m)
        denom = jnp.sum(e, axis=-1, keepdims=True)
        p = e * pl.reciprocal(denom, approx=True)
        # Store only the real output columns (shrinks HBM writeback ~32x).
        o_ref[...] = jnp.clip(p[:, :n_out], 0.001, 1.0)
    return kernel


# --------------------------------------------------------------------------
# Batch-tile selection: avoid remainder padding, keep >=2 grid tiles (v7x)
# --------------------------------------------------------------------------
def _choose_tiling(B, tb_req):
    limit = min(max(8, tb_req), B)
    divs8 = [d for d in range(8, limit + 1, 8) if B % d == 0]
    if divs8:
        for pick in ([d for d in divs8 if d % 16 == 0 and B // d >= 2],
                     [d for d in divs8 if B // d >= 2],
                     [d for d in divs8 if d % 16 == 0],
                     divs8):
            if pick:
                return max(pick), B
    if B <= 4096:
        # Single full-batch tile: block dim == full array dim is always legal.
        return B, B
    # Rare fallback: huge batch with no 8-aligned divisor -> pad to a tile multiple.
    tb = _round_up(min(tb_req, 2048), 16)
    return tb, _round_up(B, tb)


# --------------------------------------------------------------------------
# Forward (expects pre-packed params)
# --------------------------------------------------------------------------
def three_fc_forward(x, packed, *, tb=512, vmem_limit_bytes=32 * 1024 * 1024):
    """x: (B, S, F) float32; packed: output of pack_three_fc_params.

    Returns (B, O) float32 matching the PyTorch forward.
    """
    B, S, F = x.shape
    assert S == packed["seq_len"]
    O = packed["n_out"]

    x2d = x.reshape(B, S * F)     # row-major: col = s*F + f (matches packing)

    tb_eff, Bp = _choose_tiling(B, tb)
    if Bp != B:
        x2d = jnp.pad(x2d, ((0, Bp - B), (0, 0)))   # rare fallback only

    grid = (Bp // tb_eff,)

    def _full(a):
        return pl.BlockSpec(a.shape, lambda i: (0, 0))

    out = pl.pallas_call(
        _make_kernel(O),
        out_shape=jax.ShapeDtypeStruct((Bp, O), jnp.float32),
        grid=grid,
        in_specs=[
            pl.BlockSpec((tb_eff, S * F), lambda i: (i, 0)),   # x batch tiles
            _full(packed["w1"]), _full(packed["b1"]),
            _full(packed["w2"]), _full(packed["b2"]),
            _full(packed["w3"]), _full(packed["b3"]),
        ],
        out_specs=pl.BlockSpec((tb_eff, O), lambda i: (i, 0)),
        compiler_params=pltpu.CompilerParams(
            dimension_semantics=("parallel",),
            vmem_limit_bytes=vmem_limit_bytes,
        ),
    )(x2d, packed["w1"], packed["b1"], packed["w2"], packed["b2"],
      packed["w3"], packed["b3"])

    return out if Bp == B else out[:B]


# --------------------------------------------------------------------------
# Pure-JAX f32 reference (matches the PyTorch forward)
# --------------------------------------------------------------------------
def _reference(x, w1, b1, w2, b2, w3, b3):
    B = x.shape[0]
    h1 = _leaky_relu(jnp.einsum("bsf,fk->bsk", x, w1) + b1)
    h2 = _leaky_relu(jnp.einsum("bsk,kj->bsj", h1, w2) + b2)
    flat = h2.reshape(B, -1)
    logits = flat @ w3 + b3
    p = jax.nn.softmax(logits, axis=-1)
    return jnp.clip(p, 0.001, 1.0)


if __name__ == "__main__":
    # Small shapes consistent with the module: inputs = (B, S, F), outputs = O.
    B, S, F, O = 16, 8, 32, 4

    key = jax.random.PRNGKey(0)
    kx, k1w, k1b, k2w, k2b, k3w, k3b = jax.random.split(key, 7)

    def lin_init(kw, kb, fan_in, fan_out):
        # Mirrors PyTorch Linear default U(-1/sqrt(fan_in), +1/sqrt(fan_in)).
        bound = 1.0 / float(np.sqrt(fan_in))
        w = jax.random.uniform(kw, (fan_in, fan_out), jnp.float32, -bound, bound)
        b = jax.random.uniform(kb, (1, fan_out), jnp.float32, -bound, bound)
        return w, b

    x = jax.random.normal(kx, (B, S, F), jnp.float32)
    w1, b1 = lin_init(k1w, k1b, F, HID)
    w2, b2 = lin_init(k2w, k2b, HID, HID)
    w3, b3 = lin_init(k3w, k3b, S * HID, O)

    # Pack / pad / cast the weights ONCE (cached; not in the per-forward path).
    packed = pack_three_fc_params(w1, b1, w2, b2, w3, b3, seq_len=S)
    for v in packed.values():
        if isinstance(v, jax.Array):
            v.block_until_ready()

    out = three_fc_forward(x, packed, tb=512)
    jax.block_until_ready(out)

    ref = _reference(x, w1, b1, w2, b2, w3, b3)
    # bf16 matmul inputs + approx reciprocal => modest tolerance vs. f32 ref.
    np.testing.assert_allclose(np.asarray(out), np.asarray(ref),
                               rtol=2e-2, atol=2e-2)

    print("KERNEL_OK")
</pallas_src>

<mosaic_0001>
module attributes {stable_mosaic.version = 11 : i64} {
  func.func @kernel(%arg0: i32, %arg1: memref<8x256xf32, #tpu.memory_space<vmem>>, %arg2: memref<256x256xbf16, #tpu.memory_space<vmem>>, %arg3: memref<1x256xf32, #tpu.memory_space<vmem>>, %arg4: memref<256x256xbf16, #tpu.memory_space<vmem>>, %arg5: memref<1x256xf32, #tpu.memory_space<vmem>>, %arg6: memref<256x128xbf16, #tpu.memory_space<vmem>>, %arg7: memref<1x128xf32, #tpu.memory_space<vmem>>, %arg8: memref<8x4xf32, #tpu.memory_space<vmem>>) attributes {dimension_semantics = [#tpu.dimension_semantics<parallel>], iteration_bounds = array<i64: 2>, scalar_prefetch = 0 : i64, scratch_operands = 0 : i64, tpu.core_type = #tpu.core_type<tc>, window_params = [{transform_indices = @transform_0, window_bounds = array<i64: 8, 256>}, {pipeline_mode = #tpu.pipeline_mode<synchronous>, transform_indices = @transform_1, window_bounds = array<i64: 256, 256>}, {pipeline_mode = #tpu.pipeline_mode<synchronous>, transform_indices = @transform_2, window_bounds = array<i64: 1, 256>}, {pipeline_mode = #tpu.pipeline_mode<synchronous>, transform_indices = @transform_3, window_bounds = array<i64: 256, 256>}, {pipeline_mode = #tpu.pipeline_mode<synchronous>, transform_indices = @transform_4, window_bounds = array<i64: 1, 256>}, {pipeline_mode = #tpu.pipeline_mode<synchronous>, transform_indices = @transform_5, window_bounds = array<i64: 256, 128>}, {pipeline_mode = #tpu.pipeline_mode<synchronous>, transform_indices = @transform_6, window_bounds = array<i64: 1, 128>}, {transform_indices = @transform_7, window_bounds = array<i64: 8, 4>}]} {
    %c0 = arith.constant 0 : index
    %c0_0 = arith.constant 0 : index
    %0 = vector.load %arg1[%c0, %c0_0] : memref<8x256xf32, #tpu.memory_space<vmem>>, vector<8x256xf32>
    %1 = arith.truncf %0 : vector<8x256xf32> to vector<8x256xbf16>
    %c0_1 = arith.constant 0 : index
    %c0_2 = arith.constant 0 : index
    %2 = vector.load %arg2[%c0_1, %c0_2] : memref<256x256xbf16, #tpu.memory_space<vmem>>, vector<256x256xbf16>
    %cst = arith.constant dense<0.000000e+00> : vector<8x256xf32>
    %3 = tpu.matmul %1, %2, %cst {dimension_numbers = #tpu.dot_dimension_numbers<[1], [0], [0], [1], [0, 0, 1, 1], [], []>} : vector<8x256xbf16>, vector<256x256xbf16>, vector<8x256xf32> -> vector<8x256xf32>
    %c0_3 = arith.constant 0 : index
    %c0_4 = arith.constant 0 : index
    %4 = vector.load %arg3[%c0_3, %c0_4] : memref<1x256xf32, #tpu.memory_space<vmem>>, vector<1x256xf32>
    %5 = vector.broadcast %4 : vector<1x256xf32> to vector<8x256xf32>
    %6 = arith.addf %3, %5 : vector<8x256xf32>
    %cst_5 = arith.constant 0.000000e+00 : f32
    %7 = vector.broadcast %cst_5 : f32 to vector<8x256xf32>
    %8 = arith.cmpf ogt, %6, %7 : vector<8x256xf32>
    %cst_6 = arith.constant 0.00999999977 : f32
    %9 = vector.broadcast %cst_6 : f32 to vector<8x256xf32>
    %10 = arith.mulf %9, %6 : vector<8x256xf32>
    %11 = arith.select %8, %6, %10 : vector<8x256xi1>, vector<8x256xf32>
    %12 = arith.truncf %11 : vector<8x256xf32> to vector<8x256xbf16>
    %c0_7 = arith.constant 0 : index
    %c0_8 = arith.constant 0 : index
    %13 = vector.load %arg4[%c0_7, %c0_8] : memref<256x256xbf16, #tpu.memory_space<vmem>>, vector<256x256xbf16>
    %cst_9 = arith.constant dense<0.000000e+00> : vector<8x256xf32>
    %14 = tpu.matmul %12, %13, %cst_9 {dimension_numbers = #tpu.dot_dimension_numbers<[1], [0], [0], [1], [0, 0, 1, 1], [], []>} : vector<8x256xbf16>, vector<256x256xbf16>, vector<8x256xf32> -> vector<8x256xf32>
    %c0_10 = arith.constant 0 : index
    %c0_11 = arith.constant 0 : index
    %15 = vector.load %arg5[%c0_10, %c0_11] : memref<1x256xf32, #tpu.memory_space<vmem>>, vector<1x256xf32>
    %16 = vector.broadcast %15 : vector<1x256xf32> to vector<8x256xf32>
    %17 = arith.addf %14, %16 : vector<8x256xf32>
    %cst_12 = arith.constant 0.000000e+00 : f32
    %18 = vector.broadcast %cst_12 : f32 to vector<8x256xf32>
    %19 = arith.cmpf ogt, %17, %18 : vector<8x256xf32>
    %cst_13 = arith.constant 0.00999999977 : f32
    %20 = vector.broadcast %cst_13 : f32 to vector<8x256xf32>
    %21 = arith.mulf %20, %17 : vector<8x256xf32>
    %22 = arith.select %19, %17, %21 : vector<8x256xi1>, vector<8x256xf32>
    %23 = arith.truncf %22 : vector<8x256xf32> to vector<8x256xbf16>
    %c0_14 = arith.constant 0 : index
    %c0_15 = arith.constant 0 : index
    %24 = vector.load %arg6[%c0_14, %c0_15] : memref<256x128xbf16, #tpu.memory_space<vmem>>, vector<256x128xbf16>
    %cst_16 = arith.constant dense<0.000000e+00> : vector<8x128xf32>
    %25 = tpu.matmul %23, %24, %cst_16 {dimension_numbers = #tpu.dot_dimension_numbers<[1], [0], [0], [1], [0, 0, 1, 1], [], []>} : vector<8x256xbf16>, vector<256x128xbf16>, vector<8x128xf32> -> vector<8x128xf32>
    %c0_17 = arith.constant 0 : index
    %c0_18 = arith.constant 0 : index
    %26 = vector.load %arg7[%c0_17, %c0_18] : memref<1x128xf32, #tpu.memory_space<vmem>>, vector<1x128xf32>
    %27 = vector.broadcast %26 : vector<1x128xf32> to vector<8x128xf32>
    %28 = arith.addf %25, %27 : vector<8x128xf32>
    %cst_19 = arith.constant dense<0xFF800000> : vector<8xf32>
    %29 = vector.multi_reduction <maximumf>, %28, %cst_19 [1] : vector<8x128xf32> to vector<8xf32>
    %30 = vector.shape_cast %29 : vector<8xf32> to vector<8x1xf32>
    %31 = vector.broadcast %30 : vector<8x1xf32> to vector<8x128xf32>
    %32 = arith.subf %28, %31 : vector<8x128xf32>
    %33 = math.exp %32 : vector<8x128xf32>
    %cst_20 = arith.constant dense<0.000000e+00> : vector<8xf32>
    %34 = vector.multi_reduction <add>, %33, %cst_20 [1] : vector<8x128xf32> to vector<8xf32>
    %35 = vector.shape_cast %34 : vector<8xf32> to vector<8x1xf32>
    %36 = tpu.reciprocal %35 {approx = true} : vector<8x1xf32> -> vector<8x1xf32>
    %37 = vector.broadcast %36 : vector<8x1xf32> to vector<8x128xf32>
    %38 = arith.mulf %33, %37 : vector<8x128xf32>
    %39 = vector.extract_strided_slice %38 {offsets = [0, 0], sizes = [8, 4], strides = [1, 1]} : vector<8x128xf32> to vector<8x4xf32>
    %cst_21 = arith.constant 1.000000e-03 : f32
    %cst_22 = arith.constant 1.000000e+00 : f32
    %40 = vector.broadcast %cst_21 : f32 to vector<8x4xf32>
    %41 = arith.maximumf %40, %39 : vector<8x4xf32>
    %42 = vector.broadcast %cst_22 : f32 to vector<8x4xf32>
    %43 = arith.minimumf %42, %41 : vector<8x4xf32>
    %c0_23 = arith.constant 0 : index
    %c0_24 = arith.constant 0 : index
    %44 = vector.load %arg8[%c0_23, %c0_24] : memref<8x4xf32, #tpu.memory_space<vmem>>, vector<8x4xf32>
    tpu.vector_store %arg8[%c0_23, %c0_24], %43 {strides = array<i32>} : memref<8x4xf32, #tpu.memory_space<vmem>>, vector<8x4xf32>,
    return
  }
  func.func @transform_0(%arg0: i32) -> (i32, i32) {
    %c0_i32 = arith.constant 0 : i32
    %c0_i32_0 = arith.constant 0 : i32
    return %arg0, %c0_i32 : i32, i32
  }
  func.func @transform_1(%arg0: i32) -> (i32, i32) {
    %c0_i32 = arith.constant 0 : i32
    %c0_i32_0 = arith.constant 0 : i32
    %c0_i32_1 = arith.constant 0 : i32
    return %c0_i32, %c0_i32_0 : i32, i32
  }
  func.func @transform_2(%arg0: i32) -> (i32, i32) {
    %c0_i32 = arith.constant 0 : i32
    %c0_i32_0 = arith.constant 0 : i32
    %c0_i32_1 = arith.constant 0 : i32
    return %c0_i32, %c0_i32_0 : i32, i32
  }
  func.func @transform_3(%arg0: i32) -> (i32, i32) {
    %c0_i32 = arith.constant 0 : i32
    %c0_i32_0 = arith.constant 0 : i32
    %c0_i32_1 = arith.constant 0 : i32
    return %c0_i32, %c0_i32_0 : i32, i32
  }
  func.func @transform_4(%arg0: i32) -> (i32, i32) {
    %c0_i32 = arith.constant 0 : i32
    %c0_i32_0 = arith.constant 0 : i32
    %c0_i32_1 = arith.constant 0 : i32
    return %c0_i32, %c0_i32_0 : i32, i32
  }
  func.func @transform_5(%arg0: i32) -> (i32, i32) {
    %c0_i32 = arith.constant 0 : i32
    %c0_i32_0 = arith.constant 0 : i32
    %c0_i32_1 = arith.constant 0 : i32
    return %c0_i32, %c0_i32_0 : i32, i32
  }
  func.func @transform_6(%arg0: i32) -> (i32, i32) {
    %c0_i32 = arith.constant 0 : i32
    %c0_i32_0 = arith.constant 0 : i32
    %c0_i32_1 = arith.constant 0 : i32
    return %c0_i32, %c0_i32_0 : i32, i32
  }
  func.func @transform_7(%arg0: i32) -> (i32, i32) {
    %c0_i32 = arith.constant 0 : i32
    %c0_i32_0 = arith.constant 0 : i32
    return %arg0, %c0_i32 : i32, i32
  }
}

</mosaic_0001>

<llo_original>
// kernel: tpu_custom_call.1
$region0: #{tpu_custom_call.1}
  #allocation0 [shape = 'u32[]', space=smem, size = 0x4, offset = 0x4, fixed_abs, tag = 'smem constant byte address 0x4 - core index']
  #allocation1 [shape = 'u32[144,128]{1,0:T(1,128)}', space=vmem, size = 0x12000, scoped, tag = 'internal scratch']
  %s0 = inlined_call_operand.hbm [shape: f32[16,256], index: 0, kind: input, shape index: {}]
  %s1 = inlined_call_operand.hbm [shape: bf16[256,256], index: 1, kind: input, shape index: {}]
  %s2 = inlined_call_operand.vmem [shape: f32[1,256], index: 2, kind: input, shape index: {}]
  %s3 = inlined_call_operand.hbm [shape: bf16[256,256], index: 3, kind: input, shape index: {}]
  %s4 = inlined_call_operand.vmem [shape: f32[1,256], index: 4, kind: input, shape index: {}]
  %s5 = inlined_call_operand.hbm [shape: bf16[256,128], index: 5, kind: input, shape index: {}]
  %s6 = inlined_call_operand.vmem [shape: f32[1,128], index: 6, kind: input, shape index: {}]
  %s7 = inlined_call_operand.vmem [shape: f32[16,4], index: 7, kind: output, shape index: {}]
  %s8 = sld [smem:[#allocation0]]
  $region77: #{tpu_custom_call.1} parent=0
    _
  %s10 = ssub.s32 1, %s8
  %s11 = scalar_select 0, %s10, %s8
  $region1: #{tpu_custom_call.1} parent=0
    #allocation2 [shape = 'u8[16384]{0}', space=vmem, size = 0x4000, scoped, tag = 'input window, operand 0']
    #allocation3 [shape = 's32[2]{0}', space=sflag, size = 0x8, scoped, tag = 'scoped memory for tpu_custom_call.1']
    #allocation4 [shape = 'u8[131072]{0}', space=vmem, size = 0x20000, scoped, tag = 'input window, operand 1, single buffered']
    #allocation5 [shape = 's32[1]{0}', space=sflag, size = 0x4, scoped, tag = 'scoped memory for tpu_custom_call.1']
    #allocation6 [shape = 'u8[131072]{0}', space=vmem, size = 0x20000, scoped, tag = 'input window, operand 3, single buffered']
    #allocation7 [shape = 'u8[65536]{0}', space=vmem, size = 0x10000, scoped, tag = 'input window, operand 5, single buffered']
    #allocation8 [shape = 's32[1]{0}', space=sflag, size = 0x4, scoped, tag = 'scoped memory for tpu_custom_call.1']
    %12 = vsyncpa [#allocation3], 0
    %s13 = scalar_lea.sflag [#allocation3], 1
    %14 = vsyncpa %s13, 0
    %15 = vsyncpa [#allocation5], 0
    %16 = vsyncpa [#allocation8], 0
    loop: start=0, step=1, limit=4
    $region2: #{tpu_custom_call.1} parent=1 // loop_pre_header
      _
    $region3: #{tpu_custom_call.1} parent=1 // loop_header
      %s18 = sphi 0, %s22
      %p19 = scmp.ge.s32.totalorder %s18, 4
      %s28 = sphi 0, %s30
      %s31 = sphi 0, %s28
      %s32 = sphi 0, %s31
      %s48 = sphi 0, %s32
      %s52 = sphi 0, %s52
      %s54 = sphi 0, %s52
      %s55 = sphi 0, %s54
      %s69 = sphi 0, %s55
      %s73 = sphi 0, %s73
      %s75 = sphi 0, %s73
      %s76 = sphi 0, %s75
      %s90 = sphi 0, %s76
      %s94 = sphi 0, %s94
      %s96 = sphi 0, %s94
      %s97 = sphi 0, %s96
      %s111 = sphi 0, %s97
      %s115 = sphi 0, %s115
      %s117 = sphi 0, %s115
      %s118 = sphi 0, %s117
      %s132 = sphi 0, %s118
      %s136 = sphi 0, %s136
      %s138 = sphi 0, %s136
      %s139 = sphi 0, %s138
      %s153 = sphi 0, %s139
      %s157 = sphi 0, %s157
      %s159 = sphi 0, %s157
      %s160 = sphi 0, %s159
      %s174 = sphi 0, %s160
      %s180 = sphi 0, %s182
      %s183 = sphi 0, %s180
      %s184 = sphi 0, %s183
      %s200 = sphi 0, %s184
    $region4: #{tpu_custom_call.1} parent=1 // loop_header_branch
      %21 = sbr.rel (%p19) target = $region8
    $region5: #{tpu_custom_call.1} parent=1 // loop_body
      %s23 = ssub.s32 %s18, 1
      %s24 = ssub.s32 %s18, 2
      %s25 = sadd.s32 %s18, 1
      %s26 = ssub.s32 %s18, %s25
      %p27 = scmp.eq.s32.totalorder %s26, 0
      %s29 = sadd.s32 %s28, 1
      %s30 = scalar_select %p27, %s28, %s29
      %p33 = pneg %p27
      %p34 = scmp.eq.s32.totalorder %s18, 1
      %p35 = por %p33, %p34
      %p36 = scmp.ne.s32.totalorder %s28, %s31
      %p37 = scmp.eq.s32.totalorder %s18, 0
      %p38 = por %p36, %p37
      %p39 = scmp.ne.s32.totalorder %s28, %s31
      %p40 = scmp.eq.s32.totalorder %s23, 1
      %p41 = por %p39, %p40
      %p42 = scmp.ne.s32.totalorder %s31, %s32
      %p43 = scmp.eq.s32.totalorder %s23, 0
      %p44 = por %p42, %p43
      %p45 = scmp.ne.s32.totalorder %s31, %s32
      %p46 = scmp.eq.s32.totalorder %s24, 1
      %p47 = por %p45, %p46
      %p49 = scmp.ne.s32.totalorder %s32, %s48
      %p50 = scmp.eq.s32.totalorder %s24, 0
      %p51 = por %p49, %p50
      %s53 = sadd.s32 %s52, 1
      %p56 = scmp.eq.s32.totalorder %s18, 1
      %p57 = scmp.ne.s32.totalorder %s52, %s54
      %p58 = scmp.eq.s32.totalorder %s18, 0
      %p59 = por %p57, %p58
      %p60 = scmp.ne.s32.totalorder %s52, %s54
      %p61 = scmp.eq.s32.totalorder %s23, 1
      %p62 = por %p60, %p61
      %p63 = scmp.ne.s32.totalorder %s54, %s55
      %p64 = scmp.eq.s32.totalorder %s23, 0
      %p65 = por %p63, %p64
      %p66 = scmp.ne.s32.totalorder %s54, %s55
      %p67 = scmp.eq.s32.totalorder %s24, 1
      %p68 = por %p66, %p67
      %p70 = scmp.ne.s32.totalorder %s55, %s69
      %p71 = scmp.eq.s32.totalorder %s24, 0
      %p72 = por %p70, %p71
      %s74 = sadd.s32 %s73, 1
      %p77 = scmp.eq.s32.totalorder %s18, 1
      %p78 = scmp.ne.s32.totalorder %s73, %s75
      %p79 = scmp.eq.s32.totalorder %s18, 0
      %p80 = por %p78, %p79
      %p81 = scmp.ne.s32.totalorder %s73, %s75
      %p82 = scmp.eq.s32.totalorder %s23, 1
      %p83 = por %p81, %p82
      %p84 = scmp.ne.s32.totalorder %s75, %s76
      %p85 = scmp.eq.s32.totalorder %s23, 0
      %p86 = por %p84, %p85
      %p87 = scmp.ne.s32.totalorder %s75, %s76
      %p88 = scmp.eq.s32.totalorder %s24, 1
      %p89 = por %p87, %p88
      %p91 = scmp.ne.s32.totalorder %s76, %s90
      %p92 = scmp.eq.s32.totalorder %s24, 0
      %p93 = por %p91, %p92
      %s95 = sadd.s32 %s94, 1
      %p98 = scmp.eq.s32.totalorder %s18, 1
      %p99 = scmp.ne.s32.totalorder %s94, %s96
      %p100 = scmp.eq.s32.totalorder %s18, 0
      %p101 = por %p99, %p100
      %p102 = scmp.ne.s32.totalorder %s94, %s96
      %p103 = scmp.eq.s32.totalorder %s23, 1
      %p104 = por %p102, %p103
      %p105 = scmp.ne.s32.totalorder %s96, %s97
      %p106 = scmp.eq.s32.totalorder %s23, 0
      %p107 = por %p105, %p106
      %p108 = scmp.ne.s32.totalorder %s96, %s97
      %p109 = scmp.eq.s32.totalorder %s24, 1
      %p110 = por %p108, %p109
      %p112 = scmp.ne.s32.totalorder %s97, %s111
      %p113 = scmp.eq.s32.totalorder %s24, 0
      %p114 = por %p112, %p113
      %s116 = sadd.s32 %s115, 1
      %p119 = scmp.eq.s32.totalorder %s18, 1
      %p120 = scmp.ne.s32.totalorder %s115, %s117
      %p121 = scmp.eq.s32.totalorder %s18, 0
      %p122 = por %p120, %p121
      %p123 = scmp.ne.s32.totalorder %s115, %s117
      %p124 = scmp.eq.s32.totalorder %s23, 1
      %p125 = por %p123, %p124
      %p126 = scmp.ne.s32.totalorder %s117, %s118
      %p127 = scmp.eq.s32.totalorder %s23, 0
      %p128 = por %p126, %p127
      %p129 = scmp.ne.s32.totalorder %s117, %s118
      %p130 = scmp.eq.s32.totalorder %s24, 1
      %p131 = por %p129, %p130
      %p133 = scmp.ne.s32.totalorder %s118, %s132
      %p134 = scmp.eq.s32.totalorder %s24, 0
      %p135 = por %p133, %p134
      %s137 = sadd.s32 %s136, 1
      %p140 = scmp.eq.s32.totalorder %s18, 1
      %p141 = scmp.ne.s32.totalorder %s136, %s138
      %p142 = scmp.eq.s32.totalorder %s18, 0
      %p143 = por %p141, %p142
      %p144 = scmp.ne.s32.totalorder %s136, %s138
      %p145 = scmp.eq.s32.totalorder %s23, 1
      %p146 = por %p144, %p145
      %p147 = scmp.ne.s32.totalorder %s138, %s139
      %p148 = scmp.eq.s32.totalorder %s23, 0
      %p149 = por %p147, %p148
      %p150 = scmp.ne.s32.totalorder %s138, %s139
      %p151 = scmp.eq.s32.totalorder %s24, 1
      %p152 = por %p150, %p151
      %p154 = scmp.ne.s32.totalorder %s139, %s153
      %p155 = scmp.eq.s32.totalorder %s24, 0
      %p156 = por %p154, %p155
      %s158 = sadd.s32 %s157, 1
      %p161 = scmp.eq.s32.totalorder %s18, 1
      %p162 = scmp.ne.s32.totalorder %s157, %s159
      %p163 = scmp.eq.s32.totalorder %s18, 0
      %p164 = por %p162, %p163
      %p165 = scmp.ne.s32.totalorder %s157, %s159
      %p166 = scmp.eq.s32.totalorder %s23, 1
      %p167 = por %p165, %p166
      %p168 = scmp.ne.s32.totalorder %s159, %s160
      %p169 = scmp.eq.s32.totalorder %s23, 0
      %p170 = por %p168, %p169
      %p171 = scmp.ne.s32.totalorder %s159, %s160
      %p172 = scmp.eq.s32.totalorder %s24, 1
      %p173 = por %p171, %p172
      %p175 = scmp.ne.s32.totalorder %s160, %s174
      %p176 = scmp.eq.s32.totalorder %s24, 0
      %p177 = por %p175, %p176
      %s178 = ssub.s32 %s18, %s25
      %p179 = scmp.eq.s32.totalorder %s178, 0
      %s181 = sadd.s32 %s180, 1
      %s182 = scalar_select %p179, %s180, %s181
      %p185 = pneg %p179
      %p186 = scmp.eq.s32.totalorder %s18, 1
      %p187 = por %p185, %p186
      %p188 = scmp.ne.s32.totalorder %s180, %s183
      %p189 = scmp.eq.s32.totalorder %s18, 0
      %p190 = por %p188, %p189
      %p191 = scmp.ne.s32.totalorder %s180, %s183
      %p192 = scmp.eq.s32.totalorder %s23, 1
      %p193 = por %p191, %p192
      %p194 = scmp.ne.s32.totalorder %s183, %s184
      %p195 = scmp.eq.s32.totalorder %s23, 0
      %p196 = por %p194, %p195
      %p197 = scmp.ne.s32.totalorder %s183, %s184
      %p198 = scmp.eq.s32.totalorder %s24, 1
      %p199 = por %p197, %p198
      %p201 = scmp.ne.s32.totalorder %s184, %s200
      %p202 = scmp.eq.s32.totalorder %s24, 0
      %p203 = por %p201, %p202
      %p204 = scmp.le.s32.totalorder 1, %s18
      %p205 = scmp.lt.s32.totalorder %s18, 3
      %p206 = pnand %p204, %p205
      %p207 = pneg %p206
      // Predicated region
      $region9: #{tpu_custom_call.1} parent=5 // pred_check
        _
      $region10: #{tpu_custom_call.1} parent=5 // pred_check_branch
        %209 = sbr.rel (%p206) target = $region12
      $region11: #{tpu_custom_call.1} parent=5 // pred_region
        %s210 = ssub.s32 %s18, 1
        // Predicated region
        $region13: #{tpu_custom_call.1} parent=11 // pred_check
          %p211 = pneg %p65
        $region14: #{tpu_custom_call.1} parent=11 // pred_check_branch
          %213 = sbr.rel (%p211) target = $region16
        $region15: #{tpu_custom_call.1} parent=11 // pred_region
          %s215 = ssub.s32 4096, 4096
          %216 = vsyncadd [#allocation5], %s215
          %s217 = sshll.u32 [#allocation4], 4
          %s218 = int_to_ptr.vmem [resolvable:$true] %s217
          %223 = dma.hbm_to_vmem [thread:$0]  %s1, 4096, %s218, [#allocation5], 128, 128, 8
        $region16: #{tpu_custom_call.1} parent=11 // pred_fallthru
          _
        // Predicated region
        $region17: #{tpu_custom_call.1} parent=11 // pred_check
          %p224 = pneg %p86
        $region18: #{tpu_custom_call.1} parent=11 // pred_check_branch
          %226 = sbr.rel (%p224) target = $region20
        $region19: #{tpu_custom_call.1} parent=11 // pred_region
          _
        $region20: #{tpu_custom_call.1} parent=11 // pred_fallthru
          _
        // Predicated region
        $region21: #{tpu_custom_call.1} parent=11 // pred_check
          %p227 = pneg %p107
        $region22: #{tpu_custom_call.1} parent=11 // pred_check_branch
          %229 = sbr.rel (%p227) target = $region24
        $region23: #{tpu_custom_call.1} parent=11 // pred_region
          %s231 = ssub.s32 4096, 4096
          %232 = vsyncadd [#allocation5], %s231
          %s233 = sshll.u32 [#allocation6], 4
          %s234 = int_to_ptr.vmem [resolvable:$true] %s233
          %239 = dma.hbm_to_vmem [thread:$0]  %s3, 4096, %s234, [#allocation5], 128, 128, 8
        $region24: #{tpu_custom_call.1} parent=11 // pred_fallthru
          _
        // Predicated region
        $region25: #{tpu_custom_call.1} parent=11 // pred_check
          %p240 = pneg %p128
        $region26: #{tpu_custom_call.1} parent=11 // pred_check_branch
          %242 = sbr.rel (%p240) target = $region28
        $region27: #{tpu_custom_call.1} parent=11 // pred_region
          _
        $region28: #{tpu_custom_call.1} parent=11 // pred_fallthru
          _
        // Predicated region
        $region29: #{tpu_custom_call.1} parent=11 // pred_check
          %p243 = pneg %p149
        $region30: #{tpu_custom_call.1} parent=11 // pred_check_branch
          %245 = sbr.rel (%p243) target = $region32
        $region31: #{tpu_custom_call.1} parent=11 // pred_region
          %s247 = ssub.s32 2048, 2048
          %248 = vsyncadd [#allocation8], %s247
          %s249 = sshll.u32 [#allocation7], 4
          %s250 = int_to_ptr.vmem [resolvable:$true] %s249
          %255 = dma.hbm_to_vmem [thread:$0]  %s5, 2048, %s250, [#allocation8], 64, 64, 4
        $region32: #{tpu_custom_call.1} parent=11 // pred_fallthru
          _
        // Predicated region
        $region33: #{tpu_custom_call.1} parent=11 // pred_check
          %p256 = pneg %p170
        $region34: #{tpu_custom_call.1} parent=11 // pred_check_branch
          %258 = sbr.rel (%p256) target = $region36
        $region35: #{tpu_custom_call.1} parent=11 // pred_region
          _
        $region36: #{tpu_custom_call.1} parent=11 // pred_fallthru
          _
      $region12: #{tpu_custom_call.1} parent=5 // pred_fallthru
        _
      %p259 = scmp.lt.s32.totalorder %s18, 2
      // Predicated region
      $region37: #{tpu_custom_call.1} parent=5 // pred_check
        %p260 = pneg %p259
      $region38: #{tpu_custom_call.1} parent=5 // pred_check_branch
        %262 = sbr.rel (%p260) target = $region40
      $region39: #{tpu_custom_call.1} parent=5 // pred_region
        // Predicated region
        $region41: #{tpu_custom_call.1} parent=39 // pred_check
          %p263 = pneg %p38
        $region42: #{tpu_custom_call.1} parent=39 // pred_check_branch
          %265 = sbr.rel (%p263) target = $region44
        $region43: #{tpu_custom_call.1} parent=39 // pred_region
          %s266 = sand.u32 %s28, 1
          %s267 = scalar_lea.sflag [#allocation3], %s266
          %s268 = sand.u32 %s28, 1
          %s269 = smul.addr %s268, 16
          %s270 = scalar_lea.vmem [#allocation2], %s269
          %s272 = ssub.s32 256, 256
          %273 = vsyncadd %s267, %s272
          %s274 = smul.addr %s18, 2
          %s275 = smul.addr %s274, 128
          %s276 = scalar_lea.hbm %s0, %s275
          %s278 = sshll.u32 %s270, 4
          %s279 = int_to_ptr.vmem [resolvable:$true] %s278
          %281 = dma.hbm_to_vmem [thread:$0]  %s276, 256, %s279, %s267
        $region44: #{tpu_custom_call.1} parent=39 // pred_fallthru
          _
      $region40: #{tpu_custom_call.1} parent=5 // pred_fallthru
        _
      %p282 = scmp.le.s32.totalorder 1, %s18
      %p283 = scmp.lt.s32.totalorder %s18, 3
      %p284 = pnand %p282, %p283
      %p285 = pneg %p284
      // Predicated region
      $region45: #{tpu_custom_call.1} parent=5 // pred_check
        _
      $region46: #{tpu_custom_call.1} parent=5 // pred_check_branch
        %287 = sbr.rel (%p284) target = $region48
      $region47: #{tpu_custom_call.1} parent=5 // pred_region
        %s288 = ssub.s32 %s18, 1
        %s289 = sand.u32 %s31, 1
        %s290 = scalar_lea.sflag [#allocation3], %s289
        %s291 = sand.u32 %s31, 1
        %s292 = smul.addr %s291, 16
        %s293 = scalar_lea.vmem [#allocation2], %s292
        // Predicated region
        $region49: #{tpu_custom_call.1} parent=47 // pred_check
          %p294 = pneg %p44
        $region50: #{tpu_custom_call.1} parent=47 // pred_check_branch
          %296 = sbr.rel (%p294) target = $region52
        $region51: #{tpu_custom_call.1} parent=47 // pred_region
          %297 = dma.done %s290, 256
        $region52: #{tpu_custom_call.1} parent=47 // pred_fallthru
          _
        // Predicated region
        $region53: #{tpu_custom_call.1} parent=47 // pred_check
          %p298 = pneg %p65
        $region54: #{tpu_custom_call.1} parent=47 // pred_check_branch
          %300 = sbr.rel (%p298) target = $region56
        $region55: #{tpu_custom_call.1} parent=47 // pred_region
          %301 = dma.done [#allocation5], 4096
        $region56: #{tpu_custom_call.1} parent=47 // pred_fallthru
          _
        // Predicated region
        $region57: #{tpu_custom_call.1} parent=47 // pred_check
          %p302 = pneg %p107
        $region58: #{tpu_custom_call.1} parent=47 // pred_check_branch
          %304 = sbr.rel (%p302) target = $region60
        $region59: #{tpu_custom_call.1} parent=47 // pred_region
          %305 = dma.done [#allocation5], 4096
        $region60: #{tpu_custom_call.1} parent=47 // pred_fallthru
          _
        // Predicated region
        $region61: #{tpu_custom_call.1} parent=47 // pred_check
          %p306 = pneg %p149
        $region62: #{tpu_custom_call.1} parent=47 // pred_check_branch
          %308 = sbr.rel (%p306) target = $region64
        $region63: #{tpu_custom_call.1} parent=47 // pred_region
          %309 = dma.done [#allocation8], 2048
        $region64: #{tpu_custom_call.1} parent=47 // pred_fallthru
          _
        %s310 = sand.u32 %s31, 1
        %s311 = scalar_lea.sflag [#allocation3], %s310
        %s312 = sand.u32 %s31, 1
        %s313 = smul.addr %s312, 16
        %s314 = scalar_lea.vmem [#allocation2], %s313
        %p315 = pneg %p44
        %p316 = pneg %p41
        %p317 = pneg %p65
        %p318 = pneg %p62
        %p319 = pneg %p86
        %p320 = pneg %p83
        %p321 = pneg %p107
        %p322 = pneg %p104
        %p323 = pneg %p128
        %p324 = pneg %p125
        %p325 = pneg %p149
        %p326 = pneg %p146
        %p327 = pneg %p170
        %p328 = pneg %p167
        %p329 = pneg %p196
        %p330 = pneg %p193
        %p331 = scmp.lt.s32.totalorder %s23, 1
        %s332 = scalar_select %p331, %s23, 1
        %s333 = smul.addr %s332, 8
        %s334 = scalar_lea.vmem %s7, %s333
        %p335 = scmp.lt.s32.totalorder %s23, 1
        %s336 = scalar_select %p335, %s23, 1
        %s337 = smul.addr %s336, 8
        %s338 = scalar_lea.vmem %s7, %s337
        %v340 = vld [vmem:[%s293] sm:$0xff]
        %v341 = vld [vmem:[%s293 + $0x8] sm:$0xff]
        %v342 = vpack.c.bf16 %v340, %v340
        %v343 = vpack.c.bf16 %v341, %v341
        %v344 = vld [vmem:[#allocation4] sm:$0xff]
        %v345 = vld [vmem:[#allocation4 + $0x8] sm:$0xff]
        %v346 = vld [vmem:[#allocation4 + $0x10] sm:$0xff]
        %v347 = vld [vmem:[#allocation4 + $0x18] sm:$0xff]
        %v348 = vld [vmem:[#allocation4 + $0x20] sm:$0xff]
        %v349 = vld [vmem:[#allocation4 + $0x28] sm:$0xff]
        %v350 = vld [vmem:[#allocation4 + $0x30] sm:$0xff]
        %v351 = vld [vmem:[#allocation4 + $0x38] sm:$0xff]
        %v352 = vld [vmem:[#allocation4 + $0x40] sm:$0xff]
        %v353 = vld [vmem:[#allocation4 + $0x48] sm:$0xff]
        %v354 = vld [vmem:[#allocation4 + $0x50] sm:$0xff]
        %v355 = vld [vmem:[#allocation4 + $0x58] sm:$0xff]
        %v356 = vld [vmem:[#allocation4 + $0x60] sm:$0xff]
        %v357 = vld [vmem:[#allocation4 + $0x68] sm:$0xff]
        %v358 = vld [vmem:[#allocation4 + $0x70] sm:$0xff]
        %v359 = vld [vmem:[#allocation4 + $0x78] sm:$0xff]
        %v360 = vld [vmem:[#allocation4 + $0x80] sm:$0xff]
        %v361 = vld [vmem:[#allocation4 + $0x88] sm:$0xff]
        %v362 = vld [vmem:[#allocation4 + $0x90] sm:$0xff]
        %v363 = vld [vmem:[#allocation4 + $0x98] sm:$0xff]
        %v364 = vld [vmem:[#allocation4 + $0xa0] sm:$0xff]
        %v365 = vld [vmem:[#allocation4 + $0xa8] sm:$0xff]
        %v366 = vld [vmem:[#allocation4 + $0xb0] sm:$0xff]
        %v367 = vld [vmem:[#allocation4 + $0xb8] sm:$0xff]
        %v368 = vld [vmem:[#allocation4 + $0xc0] sm:$0xff]
        %v369 = vld [vmem:[#allocation4 + $0xc8] sm:$0xff]
        %v370 = vld [vmem:[#allocation4 + $0xd0] sm:$0xff]
        %v371 = vld [vmem:[#allocation4 + $0xd8] sm:$0xff]
        %v372 = vld [vmem:[#allocation4 + $0xe0] sm:$0xff]
        %v373 = vld [vmem:[#allocation4 + $0xe8] sm:$0xff]
        %v374 = vld [vmem:[#allocation4 + $0xf0] sm:$0xff]
        %v375 = vld [vmem:[#allocation4 + $0xf8] sm:$0xff]
        %v376 = vld [vmem:[%s2] sm:$0x3]
        %v378 = vlaneseq
        %v379 = vshrl.u32 %v378, 7
        %v380 = vsub.s32 0, %v379
        %v381 = vrot.slane %v376, %v380
        %v382 = vlaneseq
        %v383 = vshrl.u32 %v382, 7
        %v384 = vsub.s32 1, %v383
        %v385 = vrot.slane %v376, %v384
        %v420 = vunpack.c.l.b16 %v344
        %v421 = vunpack.c.h.b16 %v344
        %v422 = vunpack.c.l.b16 %v345
        %v423 = vunpack.c.h.b16 %v345
        %v424 = vunpack.c.l.b16 %v346
        %v425 = vunpack.c.h.b16 %v346
        %v426 = vunpack.c.l.b16 %v347
        %v427 = vunpack.c.h.b16 %v347
        %v428 = vunpack.c.l.b16 %v348
        %v429 = vunpack.c.h.b16 %v348
        %v430 = vunpack.c.l.b16 %v349
        %v431 = vunpack.c.h.b16 %v349
        %v432 = vunpack.c.l.b16 %v350
        %v433 = vunpack.c.h.b16 %v350
        %v434 = vunpack.c.l.b16 %v351
        %v435 = vunpack.c.h.b16 %v351
        %v436 = vunpack.c.l.b16 %v352
        %v437 = vunpack.c.h.b16 %v352
        %v438 = vunpack.c.l.b16 %v353
        %v439 = vunpack.c.h.b16 %v353
        %v440 = vunpack.c.l.b16 %v354
        %v441 = vunpack.c.h.b16 %v354
        %v442 = vunpack.c.l.b16 %v355
        %v443 = vunpack.c.h.b16 %v355
        %v444 = vunpack.c.l.b16 %v356
        %v445 = vunpack.c.h.b16 %v356
        %v446 = vunpack.c.l.b16 %v357
        %v447 = vunpack.c.h.b16 %v357
        %v448 = vunpack.c.l.b16 %v358
        %v449 = vunpack.c.h.b16 %v358
        %v450 = vunpack.c.l.b16 %v359
        %v451 = vunpack.c.h.b16 %v359
        %v452 = vunpack.c.l.b16 %v360
        %v453 = vunpack.c.h.b16 %v360
        %v454 = vunpack.c.l.b16 %v361
        %v455 = vunpack.c.h.b16 %v361
        %v456 = vunpack.c.l.b16 %v362
        %v457 = vunpack.c.h.b16 %v362
        %v458 = vunpack.c.l.b16 %v363
        %v459 = vunpack.c.h.b16 %v363
        %v460 = vunpack.c.l.b16 %v364
        %v461 = vunpack.c.h.b16 %v364
        %v462 = vunpack.c.l.b16 %v365
        %v463 = vunpack.c.h.b16 %v365
        %v464 = vunpack.c.l.b16 %v366
        %v465 = vunpack.c.h.b16 %v366
        %v466 = vunpack.c.l.b16 %v367
        %v467 = vunpack.c.h.b16 %v367
        %v468 = vunpack.c.l.b16 %v368
        %v469 = vunpack.c.h.b16 %v368
        %v470 = vunpack.c.l.b16 %v369
        %v471 = vunpack.c.h.b16 %v369
        %v472 = vunpack.c.l.b16 %v370
        %v473 = vunpack.c.h.b16 %v370
        %v474 = vunpack.c.l.b16 %v371
        %v475 = vunpack.c.h.b16 %v371
        %v476 = vunpack.c.l.b16 %v372
        %v477 = vunpack.c.h.b16 %v372
        %v478 = vunpack.c.l.b16 %v373
        %v479 = vunpack.c.h.b16 %v373
        %v480 = vunpack.c.l.b16 %v374
        %v481 = vunpack.c.h.b16 %v374
        %v482 = vunpack.c.l.b16 %v375
        %v483 = vunpack.c.h.b16 %v375
        %v484 = vpack.c.b16 %v422, %v420
        %v485 = vpack.c.b16 %v423, %v421
        %v486 = vpack.c.b16 %v426, %v424
        %v487 = vpack.c.b16 %v427, %v425
        %v488 = vpack.c.b16 %v430, %v428
        %v489 = vpack.c.b16 %v431, %v429
        %v490 = vpack.c.b16 %v434, %v432
        %v491 = vpack.c.b16 %v435, %v433
        %v492 = vpack.c.b16 %v438, %v436
        %v493 = vpack.c.b16 %v439, %v437
        %v494 = vpack.c.b16 %v442, %v440
        %v495 = vpack.c.b16 %v443, %v441
        %v496 = vpack.c.b16 %v446, %v444
        %v497 = vpack.c.b16 %v447, %v445
        %v498 = vpack.c.b16 %v450, %v448
        %v499 = vpack.c.b16 %v451, %v449
        %v500 = vpack.c.b16 %v454, %v452
        %v501 = vpack.c.b16 %v455, %v453
        %v502 = vpack.c.b16 %v458, %v456
        %v503 = vpack.c.b16 %v459, %v457
        %v504 = vpack.c.b16 %v462, %v460
        %v505 = vpack.c.b16 %v463, %v461
        %v506 = vpack.c.b16 %v466, %v464
        %v507 = vpack.c.b16 %v467, %v465
        %v508 = vpack.c.b16 %v470, %v468
        %v509 = vpack.c.b16 %v471, %v469
        %v510 = vpack.c.b16 %v474, %v472
        %v511 = vpack.c.b16 %v475, %v473
        %v512 = vpack.c.b16 %v478, %v476
        %v513 = vpack.c.b16 %v479, %v477
        %v514 = vpack.c.b16 %v482, %v480
        %v515 = vpack.c.b16 %v483, %v481
        %548 = vmatprep.subr.bf16.mxu0 %v499
        %549 = vmatpush1.bf16.msra.mxu0 %v498
        %550 = vmatprep.subr.bf16.mxu0 %v497
        %551 = vmatpush1.bf16.msra.mxu0 %v496
        %552 = vmatprep.subr.bf16.mxu0 %v495
        %553 = vmatpush1.bf16.msra.mxu0 %v494
        %554 = vmatprep.subr.bf16.mxu0 %v493
        %555 = vmatpush1.bf16.msra.mxu0 %v492
        %556 = vmatprep.subr.bf16.mxu0 %v491
        %557 = vmatpush1.bf16.msra.mxu0 %v490
        %558 = vmatprep.subr.bf16.mxu0 %v489
        %559 = vmatpush1.bf16.msra.mxu0 %v488
        %560 = vmatprep.subr.bf16.mxu0 %v487
        %561 = vmatpush1.bf16.msra.mxu0 %v486
        %562 = vmatprep.subr.bf16.mxu0 %v485
        %563 = vmatpush1.bf16.msra.mxu0 %v484
        %564 = vmatprep.subr.bf16.mxu0 %v515
        %565 = vmatpush2.bf16.msra.mxu0 %v514
        %566 = vmatprep.subr.bf16.mxu0 %v513
        %567 = vmatpush2.bf16.msra.mxu0 %v512
        %568 = vmatprep.subr.bf16.mxu0 %v511
        %569 = vmatpush2.bf16.msra.mxu0 %v510
        %570 = vmatprep.subr.bf16.mxu0 %v509
        %571 = vmatpush2.bf16.msra.mxu0 %v508
        %572 = vmatprep.subr.bf16.mxu0 %v507
        %573 = vmatpush2.bf16.msra.mxu0 %v506
        %574 = vmatprep.subr.bf16.mxu0 %v505
        %575 = vmatpush2.bf16.msra.mxu0 %v504
        %576 = vmatprep.subr.bf16.mxu0 %v503
        %577 = vmatpush2.bf16.msra.mxu0 %v502
        %578 = vmatprep.subr.bf16.mxu0 %v501
        %579 = vmatpush2.bf16.msra.mxu0 %v500
        %580 = vmatprep.mubr.bf16.mxu0 %v343
        %581 = vmatmul.mubr.bf16.gmra.mxu0 %v342
        %v582 = vpop.f32.mrf.mxu0
        %v583 = vadd.f32 %v381, %v582
        %v584 = vpop.f32.mrf.mxu0
        %v585 = vadd.f32 %v385, %v584
        %v586 = vpop.f32.mrf.mxu0
        %v587 = vpop.f32.mrf.mxu0
        %588 = vdwg.mxu0
        %vm589 = vcmp.gt.f32.partialorder %v583, 0.0
        %vm590 = vcmp.gt.f32.partialorder %v585, 0.0
        %v591 = vmul.f32 %v583, 0.01
        %v592 = vmul.f32 %v585, 0.01
        %v593 = vsel %vm589, %v583, %v591
        %v594 = vsel %vm590, %v585, %v592
        %v595 = vpack.c.bf16 %v593, %v593
        %v596 = vpack.c.bf16 %v594, %v594
        %v597 = vld [vmem:[#allocation6] sm:$0xff]
        %v598 = vld [vmem:[#allocation6 + $0x8] sm:$0xff]
        %v599 = vld [vmem:[#allocation6 + $0x10] sm:$0xff]
        %v600 = vld [vmem:[#allocation6 + $0x18] sm:$0xff]
        %v601 = vld [vmem:[#allocation6 + $0x20] sm:$0xff]
        %v602 = vld [vmem:[#allocation6 + $0x28] sm:$0xff]
        %v603 = vld [vmem:[#allocation6 + $0x30] sm:$0xff]
        %v604 = vld [vmem:[#allocation6 + $0x38] sm:$0xff]
        %v605 = vld [vmem:[#allocation6 + $0x40] sm:$0xff]
        %v606 = vld [vmem:[#allocation6 + $0x48] sm:$0xff]
        %v607 = vld [vmem:[#allocation6 + $0x50] sm:$0xff]
        %v608 = vld [vmem:[#allocation6 + $0x58] sm:$0xff]
        %v609 = vld [vmem:[#allocation6 + $0x60] sm:$0xff]
        %v610 = vld [vmem:[#allocation6 + $0x68] sm:$0xff]
        %v611 = vld [vmem:[#allocation6 + $0x70] sm:$0xff]
        %v612 = vld [vmem:[#allocation6 + $0x78] sm:$0xff]
        %v613 = vld [vmem:[#allocation6 + $0x80] sm:$0xff]
        %v614 = vld [vmem:[#allocation6 + $0x88] sm:$0xff]
        %v615 = vld [vmem:[#allocation6 + $0x90] sm:$0xff]
        %v616 = vld [vmem:[#allocation6 + $0x98] sm:$0xff]
        %v617 = vld [vmem:[#allocation6 + $0xa0] sm:$0xff]
        %v618 = vld [vmem:[#allocation6 + $0xa8] sm:$0xff]
        %v619 = vld [vmem:[#allocation6 + $0xb0] sm:$0xff]
        %v620 = vld [vmem:[#allocation6 + $0xb8] sm:$0xff]
        %v621 = vld [vmem:[#allocation6 + $0xc0] sm:$0xff]
        %v622 = vld [vmem:[#allocation6 + $0xc8] sm:$0xff]
        %v623 = vld [vmem:[#allocation6 + $0xd0] sm:$0xff]
        %v624 = vld [vmem:[#allocation6 + $0xd8] sm:$0xff]
        %v625 = vld [vmem:[#allocation6 + $0xe0] sm:$0xff]
        %v626 = vld [vmem:[#allocation6 + $0xe8] sm:$0xff]
        %v627 = vld [vmem:[#allocation6 + $0xf0] sm:$0xff]
        %v628 = vld [vmem:[#allocation6 + $0xf8] sm:$0xff]
        %v629 = vld [vmem:[%s4] sm:$0x3]
        %v631 = vlaneseq
        %v632 = vshrl.u32 %v631, 7
        %v633 = vsub.s32 0, %v632
        %v634 = vrot.slane %v629, %v633
        %v635 = vlaneseq
        %v636 = vshrl.u32 %v635, 7
        %v637 = vsub.s32 1, %v636
        %v638 = vrot.slane %v629, %v637
        %v673 = vunpack.c.l.b16 %v597
        %v674 = vunpack.c.h.b16 %v597
        %v675 = vunpack.c.l.b16 %v598
        %v676 = vunpack.c.h.b16 %v598
        %v677 = vunpack.c.l.b16 %v599
        %v678 = vunpack.c.h.b16 %v599
        %v679 = vunpack.c.l.b16 %v600
        %v680 = vunpack.c.h.b16 %v600
        %v681 = vunpack.c.l.b16 %v601
        %v682 = vunpack.c.h.b16 %v601
        %v683 = vunpack.c.l.b16 %v602
        %v684 = vunpack.c.h.b16 %v602
        %v685 = vunpack.c.l.b16 %v603
        %v686 = vunpack.c.h.b16 %v603
        %v687 = vunpack.c.l.b16 %v604
        %v688 = vunpack.c.h.b16 %v604
        %v689 = vunpack.c.l.b16 %v605
        %v690 = vunpack.c.h.b16 %v605
        %v691 = vunpack.c.l.b16 %v606
        %v692 = vunpack.c.h.b16 %v606
        %v693 = vunpack.c.l.b16 %v607
        %v694 = vunpack.c.h.b16 %v607
        %v695 = vunpack.c.l.b16 %v608
        %v696 = vunpack.c.h.b16 %v608
        %v697 = vunpack.c.l.b16 %v609
        %v698 = vunpack.c.h.b16 %v609
        %v699 = vunpack.c.l.b16 %v610
        %v700 = vunpack.c.h.b16 %v610
        %v701 = vunpack.c.l.b16 %v611
        %v702 = vunpack.c.h.b16 %v611
        %v703 = vunpack.c.l.b16 %v612
        %v704 = vunpack.c.h.b16 %v612
        %v705 = vunpack.c.l.b16 %v613
        %v706 = vunpack.c.h.b16 %v613
        %v707 = vunpack.c.l.b16 %v614
        %v708 = vunpack.c.h.b16 %v614
        %v709 = vunpack.c.l.b16 %v615
        %v710 = vunpack.c.h.b16 %v615
        %v711 = vunpack.c.l.b16 %v616
        %v712 = vunpack.c.h.b16 %v616
        %v713 = vunpack.c.l.b16 %v617
        %v714 = vunpack.c.h.b16 %v617
        %v715 = vunpack.c.l.b16 %v618
        %v716 = vunpack.c.h.b16 %v618
        %v717 = vunpack.c.l.b16 %v619
        %v718 = vunpack.c.h.b16 %v619
        %v719 = vunpack.c.l.b16 %v620
        %v720 = vunpack.c.h.b16 %v620
        %v721 = vunpack.c.l.b16 %v621
        %v722 = vunpack.c.h.b16 %v621
        %v723 = vunpack.c.l.b16 %v622
        %v724 = vunpack.c.h.b16 %v622
        %v725 = vunpack.c.l.b16 %v623
        %v726 = vunpack.c.h.b16 %v623
        %v727 = vunpack.c.l.b16 %v624
        %v728 = vunpack.c.h.b16 %v624
        %v729 = vunpack.c.l.b16 %v625
        %v730 = vunpack.c.h.b16 %v625
        %v731 = vunpack.c.l.b16 %v626
        %v732 = vunpack.c.h.b16 %v626
        %v733 = vunpack.c.l.b16 %v627
        %v734 = vunpack.c.h.b16 %v627
        %v735 = vunpack.c.l.b16 %v628
        %v736 = vunpack.c.h.b16 %v628
        %v737 = vpack.c.b16 %v675, %v673
        %v738 = vpack.c.b16 %v676, %v674
        %v739 = vpack.c.b16 %v679, %v677
        %v740 = vpack.c.b16 %v680, %v678
        %v741 = vpack.c.b16 %v683, %v681
        %v742 = vpack.c.b16 %v684, %v682
        %v743 = vpack.c.b16 %v687, %v685
        %v744 = vpack.c.b16 %v688, %v686
        %v745 = vpack.c.b16 %v691, %v689
        %v746 = vpack.c.b16 %v692, %v690
        %v747 = vpack.c.b16 %v695, %v693
        %v748 = vpack.c.b16 %v696, %v694
        %v749 = vpack.c.b16 %v699, %v697
        %v750 = vpack.c.b16 %v700, %v698
        %v751 = vpack.c.b16 %v703, %v701
        %v752 = vpack.c.b16 %v704, %v702
        %v753 = vpack.c.b16 %v707, %v705
        %v754 = vpack.c.b16 %v708, %v706
        %v755 = vpack.c.b16 %v711, %v709
        %v756 = vpack.c.b16 %v712, %v710
        %v757 = vpack.c.b16 %v715, %v713
        %v758 = vpack.c.b16 %v716, %v714
        %v759 = vpack.c.b16 %v719, %v717
        %v760 = vpack.c.b16 %v720, %v718
        %v761 = vpack.c.b16 %v723, %v721
        %v762 = vpack.c.b16 %v724, %v722
        %v763 = vpack.c.b16 %v727, %v725
        %v764 = vpack.c.b16 %v728, %v726
        %v765 = vpack.c.b16 %v731, %v729
        %v766 = vpack.c.b16 %v732, %v730
        %v767 = vpack.c.b16 %v735, %v733
        %v768 = vpack.c.b16 %v736, %v734
        %801 = vmatprep.subr.bf16.mxu0 %v752
        %802 = vmatpush1.bf16.msra.mxu0 %v751
        %803 = vmatprep.subr.bf16.mxu0 %v750
        %804 = vmatpush1.bf16.msra.mxu0 %v749
        %805 = vmatprep.subr.bf16.mxu0 %v748
        %806 = vmatpush1.bf16.msra.mxu0 %v747
        %807 = vmatprep.subr.bf16.mxu0 %v746
        %808 = vmatpush1.bf16.msra.mxu0 %v745
        %809 = vmatprep.subr.bf16.mxu0 %v744
        %810 = vmatpush1.bf16.msra.mxu0 %v743
        %811 = vmatprep.subr.bf16.mxu0 %v742
        %812 = vmatpush1.bf16.msra.mxu0 %v741
        %813 = vmatprep.subr.bf16.mxu0 %v740
        %814 = vmatpush1.bf16.msra.mxu0 %v739
        %815 = vmatprep.subr.bf16.mxu0 %v738
        %816 = vmatpush1.bf16.msra.mxu0 %v737
        %817 = vmatprep.subr.bf16.mxu0 %v768
        %818 = vmatpush2.bf16.msra.mxu0 %v767
        %819 = vmatprep.subr.bf16.mxu0 %v766
        %820 = vmatpush2.bf16.msra.mxu0 %v765
        %821 = vmatprep.subr.bf16.mxu0 %v764
        %822 = vmatpush2.bf16.msra.mxu0 %v763
        %823 = vmatprep.subr.bf16.mxu0 %v762
        %824 = vmatpush2.bf16.msra.mxu0 %v761
        %825 = vmatprep.subr.bf16.mxu0 %v760
        %826 = vmatpush2.bf16.msra.mxu0 %v759
        %827 = vmatprep.subr.bf16.mxu0 %v758
        %828 = vmatpush2.bf16.msra.mxu0 %v757
        %829 = vmatprep.subr.bf16.mxu0 %v756
        %830 = vmatpush2.bf16.msra.mxu0 %v755
        %831 = vmatprep.subr.bf16.mxu0 %v754
        %832 = vmatpush2.bf16.msra.mxu0 %v753
        %833 = vmatprep.mubr.bf16.mxu0 %v596
        %834 = vmatmul.mubr.bf16.gmra.mxu0 %v595
        %v835 = vpop.f32.mrf.mxu0
        %v836 = vadd.f32 %v634, %v835
        %v837 = vpop.f32.mrf.mxu0
        %v838 = vadd.f32 %v638, %v837
        %v839 = vpop.f32.mrf.mxu0
        %v840 = vpop.f32.mrf.mxu0
        %841 = vdwg.mxu0
        %vm842 = vcmp.gt.f32.partialorder %v836, 0.0
        %vm843 = vcmp.gt.f32.partialorder %v838, 0.0
        %v844 = vmul.f32 %v836, 0.01
        %v845 = vmul.f32 %v838, 0.01
        %v846 = vsel %vm842, %v836, %v844
        %v847 = vsel %vm843, %v838, %v845
        %v848 = vpack.c.bf16 %v846, %v846
        %v849 = vpack.c.bf16 %v847, %v847
        %v850 = vld [vmem:[#allocation7] sm:$0xf]
        %v851 = vld [vmem:[#allocation7 + $0x4] sm:$0xf]
        %v852 = vld [vmem:[#allocation7 + $0x8] sm:$0xf]
        %v853 = vld [vmem:[#allocation7 + $0xc] sm:$0xf]
        %v854 = vld [vmem:[#allocation7 + $0x10] sm:$0xf]
        %v855 = vld [vmem:[#allocation7 + $0x14] sm:$0xf]
        %v856 = vld [vmem:[#allocation7 + $0x18] sm:$0xf]
        %v857 = vld [vmem:[#allocation7 + $0x1c] sm:$0xf]
        %v858 = vld [vmem:[#allocation7 + $0x20] sm:$0xf]
        %v859 = vld [vmem:[#allocation7 + $0x24] sm:$0xf]
        %v860 = vld [vmem:[#allocation7 + $0x28] sm:$0xf]
        %v861 = vld [vmem:[#allocation7 + $0x2c] sm:$0xf]
        %v862 = vld [vmem:[#allocation7 + $0x30] sm:$0xf]
        %v863 = vld [vmem:[#allocation7 + $0x34] sm:$0xf]
        %v864 = vld [vmem:[#allocation7 + $0x38] sm:$0xf]
        %v865 = vld [vmem:[#allocation7 + $0x3c] sm:$0xf]
        %v866 = vld [vmem:[#allocation7 + $0x40] sm:$0xf]
        %v867 = vld [vmem:[#allocation7 + $0x44] sm:$0xf]
        %v868 = vld [vmem:[#allocation7 + $0x48] sm:$0xf]
        %v869 = vld [vmem:[#allocation7 + $0x4c] sm:$0xf]
        %v870 = vld [vmem:[#allocation7 + $0x50] sm:$0xf]
        %v871 = vld [vmem:[#allocation7 + $0x54] sm:$0xf]
        %v872 = vld [vmem:[#allocation7 + $0x58] sm:$0xf]
        %v873 = vld [vmem:[#allocation7 + $0x5c] sm:$0xf]
        %v874 = vld [vmem:[#allocation7 + $0x60] sm:$0xf]
        %v875 = vld [vmem:[#allocation7 + $0x64] sm:$0xf]
        %v876 = vld [vmem:[#allocation7 + $0x68] sm:$0xf]
        %v877 = vld [vmem:[#allocation7 + $0x6c] sm:$0xf]
        %v878 = vld [vmem:[#allocation7 + $0x70] sm:$0xf]
        %v879 = vld [vmem:[#allocation7 + $0x74] sm:$0xf]
        %v880 = vld [vmem:[#allocation7 + $0x78] sm:$0xf]
        %v881 = vld [vmem:[#allocation7 + $0x7c] sm:$0xf]
        %v882 = vld [vmem:[%s6] sm:$0x1]
        %v884 = vlaneseq
        %v885 = vshrl.u32 %v884, 7
        %v886 = vsub.s32 0, %v885
        %v887 = vrot.slane %v882, %v886
        %v921 = vunpack.c.l.b16 %v850
        %v922 = vunpack.c.l.b16 %v851
        %v923 = vunpack.c.l.b16 %v852
        %v924 = vunpack.c.l.b16 %v853
        %v925 = vunpack.c.l.b16 %v854
        %v926 = vunpack.c.l.b16 %v855
        %v927 = vunpack.c.l.b16 %v856
        %v928 = vunpack.c.l.b16 %v857
        %v929 = vunpack.c.l.b16 %v858
        %v930 = vunpack.c.l.b16 %v859
        %v931 = vunpack.c.l.b16 %v860
        %v932 = vunpack.c.l.b16 %v861
        %v933 = vunpack.c.l.b16 %v862
        %v934 = vunpack.c.l.b16 %v863
        %v935 = vunpack.c.l.b16 %v864
        %v936 = vunpack.c.l.b16 %v865
        %v937 = vunpack.c.l.b16 %v866
        %v938 = vunpack.c.l.b16 %v867
        %v939 = vunpack.c.l.b16 %v868
        %v940 = vunpack.c.l.b16 %v869
        %v941 = vunpack.c.l.b16 %v870
        %v942 = vunpack.c.l.b16 %v871
        %v943 = vunpack.c.l.b16 %v872
        %v944 = vunpack.c.l.b16 %v873
        %v945 = vunpack.c.l.b16 %v874
        %v946 = vunpack.c.l.b16 %v875
        %v947 = vunpack.c.l.b16 %v876
        %v948 = vunpack.c.l.b16 %v877
        %v949 = vunpack.c.l.b16 %v878
        %v950 = vunpack.c.l.b16 %v879
        %v951 = vunpack.c.l.b16 %v880
        %v952 = vunpack.c.l.b16 %v881
        %v953 = vpack.c.b16 %v922, %v921
        %v954 = vpack.c.b16 %v924, %v923
        %v955 = vpack.c.b16 %v926, %v925
        %v956 = vpack.c.b16 %v928, %v927
        %v957 = vpack.c.b16 %v930, %v929
        %v958 = vpack.c.b16 %v932, %v931
        %v959 = vpack.c.b16 %v934, %v933
        %v960 = vpack.c.b16 %v936, %v935
        %v961 = vpack.c.b16 %v938, %v937
        %v962 = vpack.c.b16 %v940, %v939
        %v963 = vpack.c.b16 %v942, %v941
        %v964 = vpack.c.b16 %v944, %v943
        %v965 = vpack.c.b16 %v946, %v945
        %v966 = vpack.c.b16 %v948, %v947
        %v967 = vpack.c.b16 %v950, %v949
        %v968 = vpack.c.b16 %v952, %v951
        %985 = vmatprep.subr.bf16.mxu0 0
        %986 = vmatpush1.bf16.msra.mxu0 %v960
        %987 = vmatprep.subr.bf16.mxu0 0
        %988 = vmatpush1.bf16.msra.mxu0 %v959
        %989 = vmatprep.subr.bf16.mxu0 0
        %990 = vmatpush1.bf16.msra.mxu0 %v958
        %991 = vmatprep.subr.bf16.mxu0 0
        %992 = vmatpush1.bf16.msra.mxu0 %v957
        %993 = vmatprep.subr.bf16.mxu0 0
        %994 = vmatpush1.bf16.msra.mxu0 %v956
        %995 = vmatprep.subr.bf16.mxu0 0
        %996 = vmatpush1.bf16.msra.mxu0 %v955
        %997 = vmatprep.subr.bf16.mxu0 0
        %998 = vmatpush1.bf16.msra.mxu0 %v954
        %999 = vmatprep.subr.bf16.mxu0 0
        %1000 = vmatpush1.bf16.msra.mxu0 %v953
        %1001 = vmatprep.subr.bf16.mxu0 0
        %1002 = vmatpush2.bf16.msra.mxu0 %v968
        %1003 = vmatprep.subr.bf16.mxu0 0
        %1004 = vmatpush2.bf16.msra.mxu0 %v967
        %1005 = vmatprep.subr.bf16.mxu0 0
        %1006 = vmatpush2.bf16.msra.mxu0 %v966
        %1007 = vmatprep.subr.bf16.mxu0 0
        %1008 = vmatpush2.bf16.msra.mxu0 %v965
        %1009 = vmatprep.subr.bf16.mxu0 0
        %1010 = vmatpush2.bf16.msra.mxu0 %v964
        %1011 = vmatprep.subr.bf16.mxu0 0
        %1012 = vmatpush2.bf16.msra.mxu0 %v963
        %1013 = vmatprep.subr.bf16.mxu0 0
        %1014 = vmatpush2.bf16.msra.mxu0 %v962
        %1015 = vmatprep.subr.bf16.mxu0 0
        %1016 = vmatpush2.bf16.msra.mxu0 %v961
        %1017 = vmatprep.mubr.bf16.mxu0 %v849
        %1018 = vmatmul.mubr.bf16.gmra.mxu0 %v848
        %v1019 = vpop.f32.mrf.mxu0
        %v1020 = vadd.f32 %v887, %v1019
        %v1021 = vpop.f32.mrf.mxu0
        %v1022 = vpop.f32.mrf.mxu0
        %v1023 = vpop.f32.mrf.mxu0
        %1024 = vdwg.mxu0
        %1025 = vmax.xlane.f32.xlu0 %v1020
        %v1026 = vpop.xlane.xlu0 %1025
        %v1027 = vsub.f32 %v1020, %v1026
        %v1028 = vmul.f32 %v1027, 1.442695
        %v1029 = vpow.pop %v1028
        %1030 = vadd.xlane.f32.xlu0 %v1029
        %v1031 = vpop.xlane.xlu0 %1030
        %v1032 = vrcp.pop %v1031
        %v1033 = vmul.f32 %v1029, %v1032
        %v1034 = vmax.f32 %v1033, 0.001
        %v1035 = vmin.f32 %v1034, 1.0
        %vm1036 = vcmask 31744
        %1037 = vst.msk [vmem:[%s338] sm:$0xff] %vm1036, %v1035
        %p1038 = scmp.lt.s32.totalorder %s23, 1
        %s1039 = scalar_select %p1038, %s23, 1
        %s1040 = smul.addr %s1039, 8
        %s1041 = scalar_lea.vmem %s7, %s1040
        // Predicated region
        $region65: #{tpu_custom_call.1} parent=47 // pred_check
          %p1042 = pneg %p193
        $region66: #{tpu_custom_call.1} parent=47 // pred_check_branch
          %1044 = sbr.rel (%p1042) target = $region68
        $region67: #{tpu_custom_call.1} parent=47 // pred_region
          _
        $region68: #{tpu_custom_call.1} parent=47 // pred_fallthru
          _
      $region48: #{tpu_custom_call.1} parent=5 // pred_fallthru
        _
      %p1045 = scmp.le.s32.totalorder 2, %s18
      // Predicated region
      $region69: #{tpu_custom_call.1} parent=5 // pred_check
        %p1046 = pneg %p1045
      $region70: #{tpu_custom_call.1} parent=5 // pred_check_branch
        %1048 = sbr.rel (%p1046) target = $region72
      $region71: #{tpu_custom_call.1} parent=5 // pred_region
        %s1049 = ssub.s32 %s18, 2
        // Predicated region
        $region73: #{tpu_custom_call.1} parent=71 // pred_check
          %p1050 = pneg %p199
        $region74: #{tpu_custom_call.1} parent=71 // pred_check_branch
          %1052 = sbr.rel (%p1050) target = $region76
        $region75: #{tpu_custom_call.1} parent=71 // pred_region
          %p1053 = scmp.lt.s32.totalorder %s24, 1
          %s1054 = scalar_select %p1053, %s24, 1
          %s1055 = smul.addr %s1054, 8
          %s1056 = scalar_lea.vmem %s7, %s1055
        $region76: #{tpu_custom_call.1} parent=71 // pred_fallthru
          _
      $region72: #{tpu_custom_call.1} parent=5 // pred_fallthru
        _
    $region6: #{tpu_custom_call.1} parent=1 // loop_footer
      %s22 = sadd.s32 1, %s18
    $region7: #{tpu_custom_call.1} parent=1 // loop_footer_branch
      %17 = sbr.rel target = $region3
    $region8: #{tpu_custom_call.1} parent=1 // loop_exit
      _
    %1057 = vsyncpa [#allocation3], 1
    %s1058 = scalar_lea.sflag [#allocation3], 1
    %1059 = vsyncpa %s1058, 1
    %1060 = vsyncpa [#allocation5], 1
    %1061 = vsyncpa [#allocation8], 1

</llo_original>
